<compile_context>
chip_gen: v5e
topology: v5e:2x2
jax: 0.10.0
libtpu: 0.0.40
codegen_flags: <defaults>
</compile_context>

<pallas_src>
import functools
import math

import jax
import jax.numpy as jnp
from jax.experimental import pallas as pl
from jax.experimental.pallas import tpu as pltpu


def _make_kernel(layer_dims, action_size, a_const, b_const):
    """Build the fused MLP + dual-head kernel.

    layer_dims: tuple of (in, out) per packed matrix; the last entry is the
    fused (mean | log_std) head with out = 2 * action_size.  All sizes static.
    """
    num_hidden = len(layer_dims) - 1

    def kernel(x_ref, w_ref, b_ref, mean_ref, log_std_ref):
        b_all = b_ref[...]                       # (num_hidden + 1, Pout)
        h = x_ref[...]                           # (B, state_size)

        for l in range(num_hidden):
            in_l, out_l = layer_dims[l]
            w = w_ref[l][:in_l, :out_l]          # static slice of padded tile
            b = b_all[l:l + 1, :out_l]           # (1, out_l), broadcasts
            h = jnp.dot(h, w, preferred_element_type=jnp.float32) + b
            # forward_prog activation quirk: ReLU on the first and last hidden
            # layers only; middle hidden layers are left linear.
            if l == 0 or l == num_hidden - 1:
                h = jnp.maximum(h, 0.0)

        # Fused heads: one matmul producing [mean | log_std_pre] side by side.
        in_h, out_h = layer_dims[num_hidden]
        wh = w_ref[num_hidden][:in_h, :out_h]
        bh = b_all[num_hidden:num_hidden + 1, :out_h]
        z = jnp.dot(h, wh, preferred_element_type=jnp.float32) + bh

        A = action_size
        mean_ref[...] = z[:, :A]
        # log_std = min + (max - min) * (tanh(z) + 1) / 2  ==  a*tanh(z) + b
        log_std_ref[...] = a_const * jnp.tanh(z[:, A:2 * A]) + b_const

    return kernel


@functools.partial(jax.jit, static_argnames=("log_std_min", "log_std_max"))
def soft_actor_forward(x, hidden_ws, hidden_bs, mean_w, mean_b, ls_w, ls_b,
                       log_std_min=-20.0, log_std_max=2.0):
    """Run the fused forward pass.

    x:          (B, state_size) float32
    hidden_ws:  tuple of (in, out) weight matrices
    hidden_bs:  tuple of (1, out) biases
    mean_w/b, ls_w/b: head params, (hidden_last, action) and (1, action)
    Returns (mean, log_std), each (B, action).
    """
    num_hidden = len(hidden_ws)
    B = x.shape[0]
    action_size = mean_w.shape[1]

    # --- pack parameters into two operands -------------------------------
    # Heads are fused column-wise into one (h_last, 2*A) matrix; then every
    # matrix / bias is zero-padded to a common (Pin, Pout) container and
    # stacked, so the kernel sees exactly 3 inputs (x, W_stack, b_stack).
    ws = list(hidden_ws) + [jnp.concatenate([mean_w, ls_w], axis=1)]
    bs = [b.reshape(-1) for b in hidden_bs] + [
        jnp.concatenate([mean_b, ls_b], axis=1).reshape(-1)]

    layer_dims = tuple((int(w.shape[0]), int(w.shape[1])) for w in ws)
    p_in = max(d[0] for d in layer_dims)
    p_out = max(d[1] for d in layer_dims)

    w_stack = jnp.stack([
        jnp.pad(w, ((0, p_in - w.shape[0]), (0, p_out - w.shape[1])))
        for w in ws])                              # (L+1, Pin, Pout)
    b_stack = jnp.stack([
        jnp.pad(b, (0, p_out - b.shape[0])) for b in bs])   # (L+1, Pout)

    # Fold the log_std affine into two constants.
    a_const = (float(log_std_max) - float(log_std_min)) / 2.0
    b_const = (float(log_std_max) + float(log_std_min)) / 2.0

    kernel = _make_kernel(layer_dims, action_size, a_const, b_const)

    # Tiny arrays: everything resides wholly in VMEM, single gridless
    # invocation.  Whole-array blocks satisfy the (8,128) rule by equality.
    vmem = pl.BlockSpec(memory_space=pltpu.MemorySpace.VMEM)

    mean, log_std = pl.pallas_call(
        kernel,
        out_shape=(
            jax.ShapeDtypeStruct((B, action_size), jnp.float32),
            jax.ShapeDtypeStruct((B, action_size), jnp.float32),
        ),
        in_specs=[vmem, vmem, vmem],
        out_specs=(vmem, vmem),
    )(x, w_stack, b_stack)
    return mean, log_std


def init_params(key, state_size, action_size, hidden_layers_size, init_w=0.003):
    """Deterministic parameter init mirroring PyTorch nn.Linear defaults
    (uniform(-1/sqrt(fan_in), 1/sqrt(fan_in))) and the uniform(-init_w, init_w)
    init for the mean / log_std heads."""
    hidden_ws, hidden_bs = [], []
    sizes = [state_size] + list(hidden_layers_size)
    for i in range(len(hidden_layers_size)):
        fan_in, fan_out = sizes[i], sizes[i + 1]
        bound = 1.0 / math.sqrt(fan_in)
        key, kw, kb = jax.random.split(key, 3)
        hidden_ws.append(
            jax.random.uniform(kw, (fan_in, fan_out), jnp.float32, -bound, bound))
        hidden_bs.append(
            jax.random.uniform(kb, (1, fan_out), jnp.float32, -bound, bound))

    h_last = hidden_layers_size[-1]
    key, k1, k2, k3, k4 = jax.random.split(key, 5)
    mean_w = jax.random.uniform(k1, (h_last, action_size), jnp.float32, -init_w, init_w)
    mean_b = jax.random.uniform(k2, (1, action_size), jnp.float32, -init_w, init_w)
    ls_w = jax.random.uniform(k3, (h_last, action_size), jnp.float32, -init_w, init_w)
    ls_b = jax.random.uniform(k4, (1, action_size), jnp.float32, -init_w, init_w)
    return tuple(hidden_ws), tuple(hidden_bs), mean_w, mean_b, ls_w, ls_b


def reference_forward(x, hidden_ws, hidden_bs, mean_w, mean_b, ls_w, ls_b,
                      log_std_min=-20.0, log_std_max=2.0):
    h = x
    n = len(hidden_ws)
    for l, (w, b) in enumerate(zip(hidden_ws, hidden_bs)):
        h = h @ w + b
        if l == 0 or l == n - 1:
            h = jnp.maximum(h, 0.0)
    mean = h @ mean_w + mean_b
    log_std = jnp.tanh(h @ ls_w + ls_b)
    log_std = log_std_min + (log_std_max - log_std_min) * (log_std + 1.0) / 2.0
    return mean, log_std


if __name__ == "__main__":
    # Small shapes consistent with the module: state=16, hidden=[32, 32, 32],
    # action=8.  batch=8 = one full sublane group (avoids masked rows).
    state_size = 16
    action_size = 8
    hidden_layers_size = [32, 32, 32]
    batch = 8

    key = jax.random.PRNGKey(0)
    key, kx = jax.random.split(key)
    x = jax.random.normal(kx, (batch, state_size), dtype=jnp.float32)

    params = init_params(key, state_size, action_size, hidden_layers_size)

    mean, log_std = soft_actor_forward(x, *params)
    jax.block_until_ready((mean, log_std))

    # Correctness check against a plain-JAX reference of the same math
    # (unfused heads, original affine form).
    ref_mean, ref_log_std = reference_forward(x, *params)
    assert mean.shape == (batch, action_size)
    assert log_std.shape == (batch, action_size)
    assert jnp.allclose(mean, ref_mean, atol=1e-5, rtol=1e-5)
    assert jnp.allclose(log_std, ref_log_std, atol=1e-5, rtol=1e-5)

    print("KERNEL_OK")
</pallas_src>

<mosaic_0001>
module attributes {stable_mosaic.version = 11 : i64} {
  func.func @kernel(%arg0: memref<8x16xf32, #tpu.memory_space<vmem>>, %arg1: memref<4x32x32xf32, #tpu.memory_space<vmem>>, %arg2: memref<4x32xf32, #tpu.memory_space<vmem>>, %arg3: memref<8x8xf32, #tpu.memory_space<vmem>>, %arg4: memref<8x8xf32, #tpu.memory_space<vmem>>) attributes {dimension_semantics = [], scalar_prefetch = 0 : i64, scratch_operands = 0 : i64, tpu.core_type = #tpu.core_type<tc>} {
    %c0 = arith.constant 0 : index
    %c0_0 = arith.constant 0 : index
    %0 = vector.load %arg2[%c0, %c0_0] : memref<4x32xf32, #tpu.memory_space<vmem>>, vector<4x32xf32>
    %c0_1 = arith.constant 0 : index
    %c0_2 = arith.constant 0 : index
    %1 = vector.load %arg0[%c0_1, %c0_2] : memref<8x16xf32, #tpu.memory_space<vmem>>, vector<8x16xf32>
    %c0_3 = arith.constant 0 : index
    %c0_4 = arith.constant 0 : index
    %c0_5 = arith.constant 0 : index
    %2 = vector.load %arg1[%c0_3, %c0_4, %c0_5] : memref<4x32x32xf32, #tpu.memory_space<vmem>>, vector<1x32x32xf32>
    %3 = vector.shape_cast %2 : vector<1x32x32xf32> to vector<32x32xf32>
    %4 = vector.extract_strided_slice %3 {offsets = [0, 0], sizes = [16, 32], strides = [1, 1]} : vector<32x32xf32> to vector<16x32xf32>
    %5 = vector.extract_strided_slice %0 {offsets = [0, 0], sizes = [1, 32], strides = [1, 1]} : vector<4x32xf32> to vector<1x32xf32>
    %cst = arith.constant dense<0.000000e+00> : vector<8x32xf32>
    %6 = tpu.matmul %1, %4, %cst {dimension_numbers = #tpu.dot_dimension_numbers<[1], [0], [0], [1], [0, 0, 1, 1], [], []>} : vector<8x16xf32>, vector<16x32xf32>, vector<8x32xf32> -> vector<8x32xf32>
    %7 = vector.broadcast %5 : vector<1x32xf32> to vector<8x32xf32>
    %8 = arith.addf %6, %7 : vector<8x32xf32>
    %cst_6 = arith.constant 0.000000e+00 : f32
    %9 = vector.broadcast %cst_6 : f32 to vector<8x32xf32>
    %10 = arith.maximumf %8, %9 : vector<8x32xf32>
    %c1 = arith.constant 1 : index
    %c0_7 = arith.constant 0 : index
    %c0_8 = arith.constant 0 : index
    %11 = vector.load %arg1[%c1, %c0_7, %c0_8] : memref<4x32x32xf32, #tpu.memory_space<vmem>>, vector<1x32x32xf32>
    %12 = vector.shape_cast %11 : vector<1x32x32xf32> to vector<32x32xf32>
    %13 = vector.extract_strided_slice %0 {offsets = [1, 0], sizes = [1, 32], strides = [1, 1]} : vector<4x32xf32> to vector<1x32xf32>
    %cst_9 = arith.constant dense<0.000000e+00> : vector<8x32xf32>
    %14 = tpu.matmul %10, %12, %cst_9 {dimension_numbers = #tpu.dot_dimension_numbers<[1], [0], [0], [1], [0, 0, 1, 1], [], []>} : vector<8x32xf32>, vector<32x32xf32>, vector<8x32xf32> -> vector<8x32xf32>
    %15 = vector.broadcast %13 : vector<1x32xf32> to vector<8x32xf32>
    %16 = arith.addf %14, %15 : vector<8x32xf32>
    %c2 = arith.constant 2 : index
    %c0_10 = arith.constant 0 : index
    %c0_11 = arith.constant 0 : index
    %17 = vector.load %arg1[%c2, %c0_10, %c0_11] : memref<4x32x32xf32, #tpu.memory_space<vmem>>, vector<1x32x32xf32>
    %18 = vector.shape_cast %17 : vector<1x32x32xf32> to vector<32x32xf32>
    %19 = vector.extract_strided_slice %0 {offsets = [2, 0], sizes = [1, 32], strides = [1, 1]} : vector<4x32xf32> to vector<1x32xf32>
    %cst_12 = arith.constant dense<0.000000e+00> : vector<8x32xf32>
    %20 = tpu.matmul %16, %18, %cst_12 {dimension_numbers = #tpu.dot_dimension_numbers<[1], [0], [0], [1], [0, 0, 1, 1], [], []>} : vector<8x32xf32>, vector<32x32xf32>, vector<8x32xf32> -> vector<8x32xf32>
    %21 = vector.broadcast %19 : vector<1x32xf32> to vector<8x32xf32>
    %22 = arith.addf %20, %21 : vector<8x32xf32>
    %cst_13 = arith.constant 0.000000e+00 : f32
    %23 = vector.broadcast %cst_13 : f32 to vector<8x32xf32>
    %24 = arith.maximumf %22, %23 : vector<8x32xf32>
    %c3 = arith.constant 3 : index
    %c0_14 = arith.constant 0 : index
    %c0_15 = arith.constant 0 : index
    %25 = vector.load %arg1[%c3, %c0_14, %c0_15] : memref<4x32x32xf32, #tpu.memory_space<vmem>>, vector<1x32x32xf32>
    %26 = vector.shape_cast %25 : vector<1x32x32xf32> to vector<32x32xf32>
    %27 = vector.extract_strided_slice %26 {offsets = [0, 0], sizes = [32, 16], strides = [1, 1]} : vector<32x32xf32> to vector<32x16xf32>
    %28 = vector.extract_strided_slice %0 {offsets = [3, 0], sizes = [1, 16], strides = [1, 1]} : vector<4x32xf32> to vector<1x16xf32>
    %cst_16 = arith.constant dense<0.000000e+00> : vector<8x16xf32>
    %29 = tpu.matmul %24, %27, %cst_16 {dimension_numbers = #tpu.dot_dimension_numbers<[1], [0], [0], [1], [0, 0, 1, 1], [], []>} : vector<8x32xf32>, vector<32x16xf32>, vector<8x16xf32> -> vector<8x16xf32>
    %30 = vector.broadcast %28 : vector<1x16xf32> to vector<8x16xf32>
    %31 = arith.addf %29, %30 : vector<8x16xf32>
    %32 = vector.extract_strided_slice %31 {offsets = [0, 0], sizes = [8, 8], strides = [1, 1]} : vector<8x16xf32> to vector<8x8xf32>
    %c0_17 = arith.constant 0 : index
    %c0_18 = arith.constant 0 : index
    %33 = vector.load %arg3[%c0_17, %c0_18] : memref<8x8xf32, #tpu.memory_space<vmem>>, vector<8x8xf32>
    tpu.vector_store %arg3[%c0_17, %c0_18], %32 {strides = array<i32>} : memref<8x8xf32, #tpu.memory_space<vmem>>, vector<8x8xf32>,
    %34 = vector.extract_strided_slice %31 {offsets = [0, 8], sizes = [8, 8], strides = [1, 1]} : vector<8x16xf32> to vector<8x8xf32>
    %35 = math.tanh %34 : vector<8x8xf32>
    %cst_19 = arith.constant 1.100000e+01 : f32
    %36 = vector.broadcast %cst_19 : f32 to vector<8x8xf32>
    %37 = arith.mulf %36, %35 : vector<8x8xf32>
    %cst_20 = arith.constant -9.000000e+00 : f32
    %38 = vector.broadcast %cst_20 : f32 to vector<8x8xf32>
    %39 = arith.addf %37, %38 : vector<8x8xf32>
    %c0_21 = arith.constant 0 : index
    %c0_22 = arith.constant 0 : index
    %40 = vector.load %arg4[%c0_21, %c0_22] : memref<8x8xf32, #tpu.memory_space<vmem>>, vector<8x8xf32>
    tpu.vector_store %arg4[%c0_21, %c0_22], %39 {strides = array<i32>} : memref<8x8xf32, #tpu.memory_space<vmem>>, vector<8x8xf32>,
    return
  }
}

</mosaic_0001>

<llo_original>
// kernel: soft_actor_forward.1
$region0: #{soft_actor_forward.1}
  #allocation0 [shape = 'u32[]', space=smem, size = 0x4, offset = 0x4, fixed_abs, tag = 'smem constant byte address 0x4 - core index']
  #allocation1 [shape = 'u32[72,128]{1,0:T(1,128)}', space=vmem, size = 0x9000, scoped, tag = 'internal scratch']
  %s0 = inlined_call_operand.vmem [shape: f32[8,16], index: 0, kind: input, shape index: {}]
  %s1 = inlined_call_operand.vmem [shape: f32[4,32,32], index: 1, kind: input, shape index: {}]
  %s2 = inlined_call_operand.vmem [shape: f32[4,32], index: 2, kind: input, shape index: {}]
  %s3 = inlined_call_operand.hbm [shape: f32[8,8], index: 3, kind: output, shape index: {0}]
  %s4 = inlined_call_operand.hbm [shape: f32[8,8], index: 4, kind: output, shape index: {1}]
  %5 = xla_tuple %s3, %s4
  %s6 = sld [smem:[#allocation0]]
  $region30: #{soft_actor_forward.1} parent=0
    _
  %s8 = ssub.s32 1, %s6
  %s9 = scalar_select 0, %s8, %s6
  $region1: #{soft_actor_forward.1} parent=0
    #allocation2 [shape = 'u8[4096]{0}', space=vmem, size = 0x1000, scoped, tag = 'output window, operand 0, single buffered']
    #allocation3 [shape = 's32[1]{0}', space=sflag, size = 0x4, scoped, tag = 'scoped memory for soft_actor_forward.1']
    #allocation4 [shape = 'u8[4096]{0}', space=vmem, size = 0x1000, scoped, tag = 'output window, operand 1, single buffered']
    #allocation5 [shape = 's32[1]{0}', space=sflag, size = 0x4, scoped, tag = 'scoped memory for soft_actor_forward.1']
    %10 = vsyncpa [#allocation3], 0
    %11 = vsyncpa [#allocation5], 0
    // Predicated region
    $region2: #{soft_actor_forward.1} parent=1 // pred_check
      _
    $region3: #{soft_actor_forward.1} parent=1 // pred_check_branch
      %13 = sbr.rel (0) target = $region5
    $region4: #{soft_actor_forward.1} parent=1 // pred_region
      _
    $region5: #{soft_actor_forward.1} parent=1 // pred_fallthru
      _
    // Predicated region
    $region6: #{soft_actor_forward.1} parent=1 // pred_check
      _
    $region7: #{soft_actor_forward.1} parent=1 // pred_check_branch
      %15 = sbr.rel (0) target = $region9
    $region8: #{soft_actor_forward.1} parent=1 // pred_region
      _
    $region9: #{soft_actor_forward.1} parent=1 // pred_fallthru
      _
    // Predicated region
    $region10: #{soft_actor_forward.1} parent=1 // pred_check
      _
    $region11: #{soft_actor_forward.1} parent=1 // pred_check_branch
      %17 = sbr.rel (0) target = $region13
    $region12: #{soft_actor_forward.1} parent=1 // pred_region
      _
    $region13: #{soft_actor_forward.1} parent=1 // pred_fallthru
      _
    %v18 = vld [vmem:[%s2] sm:$0xf]
    %v19 = vld [vmem:[%s0] sm:$0xff]
    %v20 = vld [vmem:[%s1] sm:$0xff]
    %v21 = vld [vmem:[%s1 + $0x8] sm:$0xff]
    %v22 = vperm.slane %v18, 0
    %vm23 = vcmask 130048
    %v25 = vsel %vm23, %v19, 0
    %27 = vmatpush.msra.mxu0 0.0
    %28 = vmatpush.msra.mxu0 0.0
    %29 = vmatpush.msra.mxu0 0.0
    %30 = vmatpush.msra.mxu0 0.0
    %31 = vmatpush.msra.mxu0 0.0
    %32 = vmatpush.msra.mxu0 0.0
    %33 = vmatpush.msra.mxu0 0.0
    %34 = vmatpush.msra.mxu0 0.0
    %35 = vmatpush.msra.mxu0 0.0
    %36 = vmatpush.msra.mxu0 0.0
    %37 = vmatpush.msra.mxu0 0.0
    %38 = vmatpush.msra.mxu0 0.0
    %39 = vmatpush.msra.mxu0 0.0
    %40 = vmatpush.msra.mxu0 0.0
    %41 = vmatpush.msra.mxu0 %v21
    %42 = vmatpush.msra.mxu0 %v20
    %43 = vmatmul.f32.gmra.mxu0 %v25
    %v44 = vpop.f32.mrf.mxu0
    %v45 = vadd.f32 %v22, %v44
    %46 = vdwg.mxu0
    %v47 = vmax.f32 %v45, 0.0
    %s48 = scalar_lea.vmem %s1, 32
    %v49 = vld [vmem:[%s48] sm:$0xff]
    %v50 = vld [vmem:[%s48 + $0x8] sm:$0xff]
    %v51 = vld [vmem:[%s48 + $0x10] sm:$0xff]
    %v52 = vld [vmem:[%s48 + $0x18] sm:$0xff]
    %v53 = vperm.slane %v18, 1
    %vm54 = vcmask 261120
    %v56 = vsel %vm54, %v47, 0
    %58 = vmatpush.msra.mxu0 0.0
    %59 = vmatpush.msra.mxu0 0.0
    %60 = vmatpush.msra.mxu0 0.0
    %61 = vmatpush.msra.mxu0 0.0
    %62 = vmatpush.msra.mxu0 0.0
    %63 = vmatpush.msra.mxu0 0.0
    %64 = vmatpush.msra.mxu0 0.0
    %65 = vmatpush.msra.mxu0 0.0
    %66 = vmatpush.msra.mxu0 0.0
    %67 = vmatpush.msra.mxu0 0.0
    %68 = vmatpush.msra.mxu0 0.0
    %69 = vmatpush.msra.mxu0 0.0
    %70 = vmatpush.msra.mxu0 %v52
    %71 = vmatpush.msra.mxu0 %v51
    %72 = vmatpush.msra.mxu0 %v50
    %73 = vmatpush.msra.mxu0 %v49
    %74 = vmatmul.f32.gmra.mxu0 %v56
    %v75 = vpop.f32.mrf.mxu0
    %v76 = vadd.f32 %v53, %v75
    %77 = vdwg.mxu0
    %s78 = scalar_lea.vmem %s1, 64
    %v79 = vld [vmem:[%s78] sm:$0xff]
    %v80 = vld [vmem:[%s78 + $0x8] sm:$0xff]
    %v81 = vld [vmem:[%s78 + $0x10] sm:$0xff]
    %v82 = vld [vmem:[%s78 + $0x18] sm:$0xff]
    %v83 = vperm.slane %v18, 2
    %v85 = vsel %vm54, %v76, 0
    %87 = vmatpush.msra.mxu0 0.0
    %88 = vmatpush.msra.mxu0 0.0
    %89 = vmatpush.msra.mxu0 0.0
    %90 = vmatpush.msra.mxu0 0.0
    %91 = vmatpush.msra.mxu0 0.0
    %92 = vmatpush.msra.mxu0 0.0
    %93 = vmatpush.msra.mxu0 0.0
    %94 = vmatpush.msra.mxu0 0.0
    %95 = vmatpush.msra.mxu0 0.0
    %96 = vmatpush.msra.mxu0 0.0
    %97 = vmatpush.msra.mxu0 0.0
    %98 = vmatpush.msra.mxu0 0.0
    %99 = vmatpush.msra.mxu0 %v82
    %100 = vmatpush.msra.mxu0 %v81
    %101 = vmatpush.msra.mxu0 %v80
    %102 = vmatpush.msra.mxu0 %v79
    %103 = vmatmul.f32.gmra.mxu0 %v85
    %v104 = vpop.f32.mrf.mxu0
    %v105 = vadd.f32 %v83, %v104
    %106 = vdwg.mxu0
    %v107 = vmax.f32 %v105, 0.0
    %s108 = scalar_lea.vmem %s1, 96
    %v109 = vld [vmem:[%s108] sm:$0xff]
    %v110 = vld [vmem:[%s108 + $0x8] sm:$0xff]
    %v111 = vld [vmem:[%s108 + $0x10] sm:$0xff]
    %v112 = vld [vmem:[%s108 + $0x18] sm:$0xff]
    %v113 = vperm.slane %v18, 3
    %v115 = vsel %vm54, %v107, 0
    %117 = vmatpush.msra.mxu0 0.0
    %118 = vmatpush.msra.mxu0 0.0
    %119 = vmatpush.msra.mxu0 0.0
    %120 = vmatpush.msra.mxu0 0.0
    %121 = vmatpush.msra.mxu0 0.0
    %122 = vmatpush.msra.mxu0 0.0
    %123 = vmatpush.msra.mxu0 0.0
    %124 = vmatpush.msra.mxu0 0.0
    %125 = vmatpush.msra.mxu0 0.0
    %126 = vmatpush.msra.mxu0 0.0
    %127 = vmatpush.msra.mxu0 0.0
    %128 = vmatpush.msra.mxu0 0.0
    %129 = vmatpush.msra.mxu0 %v112
    %130 = vmatpush.msra.mxu0 %v111
    %131 = vmatpush.msra.mxu0 %v110
    %132 = vmatpush.msra.mxu0 %v109
    %133 = vmatmul.f32.gmra.mxu0 %v115
    %v134 = vpop.f32.mrf.mxu0
    %v135 = vadd.f32 %v113, %v134
    %136 = vdwg.mxu0
    %vm137 = vcmask 64512
    %138 = vst.msk [vmem:[#allocation2] sm:$0xff] %vm137, %v135
    %v139 = vtanh.pop %v135
    %v140 = vmul.f32 %v139, 11.0
    %v141 = vadd.f32 %v140, -9.0
    %143 = vrot.lane.b32.xlu0 %v141, 120
    %v144 = vpop.permute.xlu0 %143
    %146 = vst.msk [vmem:[#allocation4] sm:$0xff] %vm137, %v144
    // Predicated region
    $region14: #{soft_actor_forward.1} parent=1 // pred_check
      _
    $region15: #{soft_actor_forward.1} parent=1 // pred_check_branch
      %148 = sbr.rel (0) target = $region17
    $region16: #{soft_actor_forward.1} parent=1 // pred_region
      %150 = vsyncadd [#allocation3], 0
      %s152 = sshll.u32 [#allocation2], 4
      %s153 = int_to_ptr.vmem [resolvable:$true] %s152
      %s154 = sshll.u32 %s3, 4
      %s155 = int_to_ptr.hbm [resolvable:$true] %s154
      %157 = dma.vmem_to_hbm [thread:$0]  %s153, 128, %s155, [#allocation3]
    $region17: #{soft_actor_forward.1} parent=1 // pred_fallthru
      _
    // Predicated region
    $region18: #{soft_actor_forward.1} parent=1 // pred_check
      _
    $region19: #{soft_actor_forward.1} parent=1 // pred_check_branch
      %159 = sbr.rel (0) target = $region21
    $region20: #{soft_actor_forward.1} parent=1 // pred_region
      %161 = vsyncadd [#allocation5], 0
      %s163 = sshll.u32 [#allocation4], 4
      %s164 = int_to_ptr.vmem [resolvable:$true] %s163
      %s165 = sshll.u32 %s4, 4
      %s166 = int_to_ptr.hbm [resolvable:$true] %s165
      %168 = dma.vmem_to_hbm [thread:$0]  %s164, 128, %s166, [#allocation5]
    $region21: #{soft_actor_forward.1} parent=1 // pred_fallthru
      _
    // Predicated region
    $region22: #{soft_actor_forward.1} parent=1 // pred_check
      _
    $region23: #{soft_actor_forward.1} parent=1 // pred_check_branch
      %170 = sbr.rel (0) target = $region25
    $region24: #{soft_actor_forward.1} parent=1 // pred_region
      %172 = dma.done [#allocation3], 128
    $region25: #{soft_actor_forward.1} parent=1 // pred_fallthru
      _
    // Predicated region
    $region26: #{soft_actor_forward.1} parent=1 // pred_check
      _
    $region27: #{soft_actor_forward.1} parent=1 // pred_check_branch
      %174 = sbr.rel (0) target = $region29
    $region28: #{soft_actor_forward.1} parent=1 // pred_region
      %176 = dma.done [#allocation5], 128
    $region29: #{soft_actor_forward.1} parent=1 // pred_fallthru
      _
    %177 = vsyncpa [#allocation3], 1
    %178 = vsyncpa [#allocation5], 1

</llo_original>
